<compile_context>
chip_gen: v7x
topology: tpu7x:2x2x1
jax: 0.10.0
libtpu: 0.0.40
codegen_flags: <defaults>
</compile_context>

<pallas_src>
import functools

import jax
import jax.numpy as jnp
from jax.experimental import pallas as pl
from jax.experimental.pallas import tpu as pltpu

_MIB = 1024 * 1024


def _round_up(a, b):
    return ((a + b - 1) // b) * b


def _hw_budgets():
    """(per-block HBM byte budget, vmem_limit_bytes), by TPU generation."""
    kind = ""
    try:
        kind = jax.devices()[0].device_kind.lower()
    except Exception:  # pragma: no cover - defensive
        pass
    if "v7" in kind:
        return 3 * _MIB, 48 * _MIB          # 64 MiB physical VMEM per TC
    if any(t in kind for t in ("v4", "v5", "v6")):
        return 6 * _MIB, 80 * _MIB          # 128 MiB physical VMEM
    return 3 * _MIB, 48 * _MIB              # unknown device: conservative


def _focal_term(one_minus_pt, gamma):
    g = float(gamma)
    if g == int(g) and 0 <= int(g) <= 8:
        gi = int(g)
        if gi == 0:
            return jnp.ones_like(one_minus_pt)
        out = one_minus_pt
        for _ in range(gi - 1):
            out = out * one_minus_pt
        return out
    # clamp: pt = exp(log_pt) can exceed 1 by an ulp -> negative base -> NaN pow
    return jnp.power(jnp.maximum(one_minus_pt, 0.0), g)


def _store_partials(out_ref, loss_sum, count):
    # Single (1, 1, 2) store: lane 0 = partial loss sum, lane 1 = valid count.
    lane = jax.lax.broadcasted_iota(jnp.int32, (1, 1, 2), 2)
    out_ref[...] = jnp.where(lane == 0, loss_sum, count).astype(jnp.float32)


def _focal_rows_kernel(x_ref, y_ref, *refs, gamma, ignore_index, n_rows,
                       row_tile, has_alpha):
    # Layout: rows on sublanes, classes on lanes.
    # x_ref: (TN, C) logits (native dtype); y_ref: (TN, 1) int32 labels.
    if has_alpha:
        alpha_ref, out_ref = refs
    else:
        alpha_ref = None
        (out_ref,) = refs

    x = x_ref[...].astype(jnp.float32)                       # (TN, C)
    y = y_ref[...]                                           # (TN, 1)

    tn = x.shape[0]
    row0 = pl.program_id(0) * row_tile
    rid = row0 + jax.lax.broadcasted_iota(jnp.int32, (tn, 1), 0)
    valid = (rid < n_rows) & (y != ignore_index)             # (TN, 1)
    y_safe = jnp.where(valid, y, 0)

    # numerically stable logsumexp along the class (lane) axis
    m = jnp.max(x, axis=-1, keepdims=True)                   # (TN, 1)
    lse = m + jnp.log(jnp.sum(jnp.exp(x - m), axis=-1, keepdims=True))

    cls = jax.lax.broadcasted_iota(jnp.int32, x.shape, 1)
    onehot = cls == y_safe                                   # (TN, C)
    # gather the target logit directly (no full-tile log_p temporary)
    x_y = jnp.sum(jnp.where(onehot, x, 0.0), axis=-1, keepdims=True)
    log_pt = x_y - lse                                       # (TN, 1)

    pt = jnp.exp(log_pt)
    ce = -log_pt
    if has_alpha:
        alpha = alpha_ref[...].astype(jnp.float32)           # (1, C)
        alpha_y = jnp.sum(jnp.where(onehot, alpha, 0.0), axis=-1, keepdims=True)
        ce = ce * alpha_y
    loss = _focal_term(1.0 - pt, gamma) * ce                 # (TN, 1)
    loss = jnp.where(valid, loss, 0.0)                       # true select (NaN-safe)

    _store_partials(out_ref, jnp.sum(loss), jnp.sum(valid.astype(jnp.float32)))


def _focal_nchw_kernel(x_ref, y_ref, *refs, gamma, ignore_index, n_batch,
                       n_cols, batch_tile, col_tile, has_alpha):
    # Layout: classes on sublanes, spatial positions on lanes (native NCHW).
    # x_ref: (BB, C, TS) logits; y_ref: (BB, 1, TS) int32 labels.
    if has_alpha:
        alpha_ref, out_ref = refs
    else:
        alpha_ref = None
        (out_ref,) = refs

    x = x_ref[...].astype(jnp.float32)                       # (BB, C, TS)
    y = y_ref[...]                                           # (BB, 1, TS)

    bb = x.shape[0]
    ts = x.shape[2]
    b0 = pl.program_id(0) * batch_tile
    s0 = pl.program_id(1) * col_tile
    bid = b0 + jax.lax.broadcasted_iota(jnp.int32, (bb, 1, ts), 0)
    sid = s0 + jax.lax.broadcasted_iota(jnp.int32, (bb, 1, ts), 2)
    valid = (bid < n_batch) & (sid < n_cols) & (y != ignore_index)  # (BB,1,TS)
    y_safe = jnp.where(valid, y, 0)

    # logsumexp along the class (sublane) axis
    m = jnp.max(x, axis=1, keepdims=True)                    # (BB, 1, TS)
    lse = m + jnp.log(jnp.sum(jnp.exp(x - m), axis=1, keepdims=True))

    cls = jax.lax.broadcasted_iota(jnp.int32, x.shape, 1)    # (BB, C, TS)
    onehot = cls == y_safe
    x_y = jnp.sum(jnp.where(onehot, x, 0.0), axis=1, keepdims=True)
    log_pt = x_y - lse                                       # (BB, 1, TS)

    pt = jnp.exp(log_pt)
    ce = -log_pt
    if has_alpha:
        alpha = alpha_ref[...].astype(jnp.float32)           # (1, C, 1)
        alpha_y = jnp.sum(jnp.where(onehot, alpha, 0.0), axis=1, keepdims=True)
        ce = ce * alpha_y
    loss = _focal_term(1.0 - pt, gamma) * ce                 # (BB, 1, TS)
    loss = jnp.where(valid, loss, 0.0)                       # true select (NaN-safe)

    _store_partials(out_ref, jnp.sum(loss), jnp.sum(valid.astype(jnp.float32)))


def focal_loss(x, y, alpha=None, *, gamma: float = 3.0,
               reduction: str = "mean", ignore_index: int = -100,
               row_tile=None, spatial_tile=None, batch_tile=None):
    """Focal loss. x: (N, C) or (B, C, d1, ..., dK); y: matching labels."""
    if reduction not in ("mean", "sum"):
        # TODO(synk): reduction='none' returns only the unignored rows (data-dependent
        # output shape / compaction); only the reduced forms are implemented in-kernel.
        raise ValueError("only 'mean' and 'sum' reductions are implemented")

    has_alpha = alpha is not None
    x = jnp.asarray(x)
    y = jnp.asarray(y)
    itemsize = int(jnp.dtype(x.dtype).itemsize)
    block_budget, vmem_limit = _hw_budgets()
    data_budget = max(4 * _MIB, vmem_limit - 16 * _MIB)

    if x.ndim > 2:
        # NCHW-style input: keep the native layout (free reshape, no transpose copy).
        b, c = int(x.shape[0]), int(x.shape[1])
        s = 1
        for d in x.shape[2:]:
            s *= int(d)
        x3 = x.reshape(b, c, s)
        y3 = y.reshape(b, 1, s).astype(jnp.int32)

        # ---- tile sizing: MiB-range HBM payload, budgeted against VMEM ----
        sub_in = max(8, 32 // max(itemsize, 1))     # sublane packing of input dtype
        cp_in = _round_up(c, sub_in)                # class-dim padding (input block)
        cp32 = _round_up(c, 8)                      # class-dim padding (f32 temps)
        per_pos_hbm = c * itemsize + 4
        per_pos_vmem = (2 * cp_in * itemsize        # double-buffered logits block
                        + 2 * 8 * 4                 # double-buffered labels (1->8 sublanes)
                        + 6 * cp32 * 4)             # ~full-tile f32/i32 temporaries
        pos_budget = max(128, min(block_budget // per_pos_hbm,
                                  data_budget // per_pos_vmem))

        if spatial_tile is not None:
            ts = int(spatial_tile)
            bb = int(batch_tile) if batch_tile is not None else 1
        elif s >= pos_budget:
            bb = 1
            ts = max(128, (pos_budget // 128) * 128)
        else:
            ts = s                                   # full spatial extent per image
            bb = max(1, min(b, pos_budget // max(s, 1)))
        bb = min(bb, b)

        grid_b = int(pl.cdiv(b, bb))
        grid_s = int(pl.cdiv(s, ts))
        # keep >= 2 parallel tiles so both v7x TensorCores have work
        if spatial_tile is None and grid_b * grid_s == 1:
            if b >= 2:
                bb = (b + 1) // 2
                grid_b = int(pl.cdiv(b, bb))
            elif s >= 256:
                ts = _round_up((s + 1) // 2, 128)
                grid_s = int(pl.cdiv(s, ts))
        n_parts = grid_b * grid_s

        in_specs = [
            pl.BlockSpec((bb, c, ts), lambda bi, si: (bi, 0, si)),
            pl.BlockSpec((bb, 1, ts), lambda bi, si: (bi, 0, si)),
        ]
        args = [x3, y3]
        if has_alpha:
            alpha_arr = jnp.asarray(alpha, jnp.float32).reshape(1, c, 1)
            in_specs.append(pl.BlockSpec((1, c, 1), lambda bi, si: (0, 0, 0)))
            args.append(alpha_arr)

        kernel = functools.partial(
            _focal_nchw_kernel, gamma=float(gamma),
            ignore_index=int(ignore_index), n_batch=b, n_cols=s,
            batch_tile=bb, col_tile=ts, has_alpha=has_alpha)

        out_idx = lambda bi, si, _gs=grid_s: (bi * _gs + si, 0, 0)
        parts = pl.pallas_call(
            kernel,
            out_shape=jax.ShapeDtypeStruct((n_parts, 1, 2), jnp.float32),
            grid_spec=pltpu.PrefetchScalarGridSpec(
                num_scalar_prefetch=0,
                grid=(grid_b, grid_s),
                in_specs=in_specs,
                out_specs=pl.BlockSpec((1, 1, 2), out_idx),
            ),
            compiler_params=pltpu.CompilerParams(
                dimension_semantics=("parallel", "parallel"),
                vmem_limit_bytes=int(vmem_limit)),
        )(*args)
    else:
        n, c = int(x.shape[0]), int(x.shape[1])
        y2 = y.reshape(n, 1).astype(jnp.int32)

        # ---- tile sizing (rows on sublanes, classes on lanes) ----
        # NOTE: for C << 128 the lane axis is padded to 128 in VMEM; that padding
        # (plus the 128-lane padded label block) is accounted for below.
        cl = _round_up(c, 128)
        per_row_hbm = c * itemsize + 4
        per_row_vmem = (2 * cl * itemsize            # double-buffered logits block
                        + 2 * 128 * 4                # double-buffered labels (1->128 lanes)
                        + 6 * cl * 4)                # ~full-tile f32/i32 temporaries
        rows_budget = max(8, min(block_budget // per_row_hbm,
                                 data_budget // per_row_vmem))

        if row_tile is not None:
            tn = int(row_tile)
        else:
            tn = min(n, (rows_budget // 8) * 8)
            if tn <= 0:
                tn = min(n, 8)
        g = int(pl.cdiv(n, tn))
        # keep >= 2 parallel tiles so both v7x TensorCores have work
        if row_tile is None and g == 1 and n >= 16:
            tn = _round_up((n + 1) // 2, 8)
            g = int(pl.cdiv(n, tn))

        in_specs = [
            pl.BlockSpec((tn, c), lambda i: (i, 0)),
            pl.BlockSpec((tn, 1), lambda i: (i, 0)),
        ]
        args = [x, y2]
        if has_alpha:
            alpha_arr = jnp.asarray(alpha, jnp.float32).reshape(1, c)
            in_specs.append(pl.BlockSpec((1, c), lambda i: (0, 0)))
            args.append(alpha_arr)

        kernel = functools.partial(
            _focal_rows_kernel, gamma=float(gamma),
            ignore_index=int(ignore_index), n_rows=n, row_tile=tn,
            has_alpha=has_alpha)

        parts = pl.pallas_call(
            kernel,
            out_shape=jax.ShapeDtypeStruct((g, 1, 2), jnp.float32),
            grid_spec=pltpu.PrefetchScalarGridSpec(
                num_scalar_prefetch=0,
                grid=(g,),
                in_specs=in_specs,
                out_specs=pl.BlockSpec((1, 1, 2), lambda i: (i, 0, 0)),
            ),
            compiler_params=pltpu.CompilerParams(
                dimension_semantics=("parallel",),
                vmem_limit_bytes=int(vmem_limit)),
        )(*args)

    loss_sum = jnp.sum(parts[..., 0], dtype=jnp.float32)
    count = jnp.sum(parts[..., 1], dtype=jnp.float32)

    if reduction == "mean":
        # matches PyTorch: returns 0.0 if every label is ignored
        return jnp.where(count > 0, loss_sum / jnp.maximum(count, 1.0), 0.0)
    return jnp.where(count > 0, loss_sum, 0.0)


def _focal_loss_ref(x, y, alpha=None, *, gamma=3.0, ignore_index=-100):
    # pure-JAX reference mirroring the PyTorch forward (reduction='mean')
    if x.ndim > 2:
        c = x.shape[1]
        perm = (0,) + tuple(range(2, x.ndim)) + (1,)
        x = jnp.transpose(x, perm).reshape(-1, c)
        y = y.reshape(-1)
    valid = y != ignore_index
    y_safe = jnp.where(valid, y, 0)
    log_p = jax.nn.log_softmax(x.astype(jnp.float32), axis=-1)
    log_pt = jnp.take_along_axis(log_p, y_safe[:, None], axis=-1)[:, 0]
    w = 1.0 if alpha is None else jnp.asarray(alpha, jnp.float32)[y_safe]
    ce = -w * log_pt
    pt = jnp.exp(log_pt)
    loss = (1.0 - pt) ** gamma * ce
    loss = jnp.where(valid, loss, 0.0)
    cnt = jnp.sum(valid)
    return jnp.where(cnt > 0, jnp.sum(loss) / jnp.maximum(cnt, 1), 0.0)


if __name__ == "__main__":
    key = jax.random.PRNGKey(0)
    kx, ky, k2x, k2y = jax.random.split(key, 4)

    # NCHW conv-style case: x (2, 4, 16, 16), y (2, 16, 16) with some ignored labels
    B, C, H, W = 2, 4, 16, 16
    x = jax.random.normal(kx, (B, C, H, W), dtype=jnp.float32)
    y = jax.random.randint(ky, (B, H, W), 0, C, dtype=jnp.int32)
    y = y.at[0, 0, :4].set(-100)

    out = focal_loss(x, y, alpha=None, gamma=3.0,
                     reduction="mean", ignore_index=-100)
    out = jax.block_until_ready(out)
    ref = _focal_loss_ref(x, y, alpha=None, gamma=3.0, ignore_index=-100)
    assert jnp.allclose(out, ref, rtol=1e-5, atol=1e-6), (out, ref)

    # plain (N, C) case with per-class alpha weights
    N2, C2 = 37, 8
    x2 = jax.random.normal(k2x, (N2, C2), dtype=jnp.float32)
    y2 = jax.random.randint(k2y, (N2,), 0, C2, dtype=jnp.int32)
    y2 = y2.at[:3].set(-100)
    alpha = jnp.linspace(0.5, 1.5, C2, dtype=jnp.float32)

    out2 = focal_loss(x2, y2, alpha=alpha, gamma=3.0,
                      reduction="mean", ignore_index=-100)
    out2 = jax.block_until_ready(out2)
    ref2 = _focal_loss_ref(x2, y2, alpha=alpha, gamma=3.0, ignore_index=-100)
    assert jnp.allclose(out2, ref2, rtol=1e-5, atol=1e-6), (out2, ref2)

    print("KERNEL_OK")
</pallas_src>

<mosaic_0001>
module attributes {stable_mosaic.version = 11 : i64} {
  func.func @_focal_nchw_kernel(%arg0: i32, %arg1: i32, %arg2: memref<1x4x256xf32, #tpu.memory_space<vmem>>, %arg3: memref<1x1x256xi32, #tpu.memory_space<vmem>>, %arg4: memref<1x1x2xf32, #tpu.memory_space<vmem>>) attributes {dimension_semantics = [#tpu.dimension_semantics<parallel>, #tpu.dimension_semantics<parallel>], iteration_bounds = array<i64: 2, 1>, scalar_prefetch = 0 : i64, scratch_operands = 0 : i64, tpu.core_type = #tpu.core_type<tc>, window_params = [{transform_indices = @transform_0, window_bounds = array<i64: 1, 4, 256>}, {transform_indices = @transform_1, window_bounds = array<i64: 1, 1, 256>}, {transform_indices = @transform_2, window_bounds = array<i64: 1, 1, 2>}]} {
    %c0 = arith.constant 0 : index
    %c0_0 = arith.constant 0 : index
    %c0_1 = arith.constant 0 : index
    %0 = vector.load %arg2[%c0, %c0_0, %c0_1] : memref<1x4x256xf32, #tpu.memory_space<vmem>>, vector<1x4x256xf32>
    %c0_2 = arith.constant 0 : index
    %c0_3 = arith.constant 0 : index
    %c0_4 = arith.constant 0 : index
    %1 = vector.load %arg3[%c0_2, %c0_3, %c0_4] : memref<1x1x256xi32, #tpu.memory_space<vmem>>, vector<1x1x256xi32>
    %c1_i32 = arith.constant 1 : i32
    %2 = arith.muli %arg0, %c1_i32 : i32
    %c256_i32 = arith.constant 256 : i32
    %3 = arith.muli %arg1, %c256_i32 : i32
    %4 = tpu.iota {dimensions = array<i32: 0>} : vector<1x1x256xi32>
    %5 = vector.broadcast %2 : i32 to vector<1x1x256xi32>
    %6 = arith.addi %5, %4 : vector<1x1x256xi32>
    %7 = tpu.iota {dimensions = array<i32: 2>} : vector<1x1x256xi32>
    %8 = vector.broadcast %3 : i32 to vector<1x1x256xi32>
    %9 = arith.addi %8, %7 : vector<1x1x256xi32>
    %c2_i32 = arith.constant 2 : i32
    %10 = vector.broadcast %c2_i32 : i32 to vector<1x1x256xi32>
    %11 = arith.cmpi slt, %6, %10 : vector<1x1x256xi32>
    %c256_i32_5 = arith.constant 256 : i32
    %12 = vector.broadcast %c256_i32_5 : i32 to vector<1x1x256xi32>
    %13 = arith.cmpi slt, %9, %12 : vector<1x1x256xi32>
    %14 = arith.andi %11, %13 : vector<1x1x256xi1>
    %c-100_i32 = arith.constant -100 : i32
    %15 = vector.broadcast %c-100_i32 : i32 to vector<1x1x256xi32>
    %16 = arith.cmpi ne, %1, %15 : vector<1x1x256xi32>
    %17 = arith.andi %14, %16 : vector<1x1x256xi1>
    %c0_i32 = arith.constant 0 : i32
    %18 = vector.broadcast %c0_i32 : i32 to vector<1x1x256xi32>
    %19 = arith.select %17, %1, %18 : vector<1x1x256xi1>, vector<1x1x256xi32>
    %cst = arith.constant dense<0xFF800000> : vector<1x256xf32>
    %20 = vector.multi_reduction <maximumf>, %0, %cst [1] : vector<1x4x256xf32> to vector<1x256xf32>
    %21 = vector.shape_cast %20 : vector<1x256xf32> to vector<1x1x256xf32>
    %22 = vector.broadcast %21 : vector<1x1x256xf32> to vector<1x4x256xf32>
    %23 = arith.subf %0, %22 : vector<1x4x256xf32>
    %24 = math.exp %23 : vector<1x4x256xf32>
    %cst_6 = arith.constant dense<0.000000e+00> : vector<1x256xf32>
    %25 = vector.multi_reduction <add>, %24, %cst_6 [1] : vector<1x4x256xf32> to vector<1x256xf32>
    %26 = vector.shape_cast %25 : vector<1x256xf32> to vector<1x1x256xf32>
    %27 = math.log %26 : vector<1x1x256xf32>
    %28 = arith.addf %21, %27 : vector<1x1x256xf32>
    %29 = tpu.iota {dimensions = array<i32: 1>} : vector<1x4x256xi32>
    %30 = vector.broadcast %19 : vector<1x1x256xi32> to vector<1x4x256xi32>
    %31 = arith.cmpi eq, %29, %30 : vector<1x4x256xi32>
    %cst_7 = arith.constant 0.000000e+00 : f32
    %32 = vector.broadcast %cst_7 : f32 to vector<1x4x256xf32>
    %33 = arith.select %31, %0, %32 : vector<1x4x256xi1>, vector<1x4x256xf32>
    %cst_8 = arith.constant dense<0.000000e+00> : vector<1x256xf32>
    %34 = vector.multi_reduction <add>, %33, %cst_8 [1] : vector<1x4x256xf32> to vector<1x256xf32>
    %35 = vector.shape_cast %34 : vector<1x256xf32> to vector<1x1x256xf32>
    %36 = arith.subf %35, %28 : vector<1x1x256xf32>
    %37 = math.exp %36 : vector<1x1x256xf32>
    %cst_9 = arith.constant 0.000000e+00 : f32
    %38 = vector.broadcast %cst_9 : f32 to vector<1x1x256xf32>
    %39 = arith.subf %38, %36 : vector<1x1x256xf32>
    %cst_10 = arith.constant 1.000000e+00 : f32
    %40 = vector.broadcast %cst_10 : f32 to vector<1x1x256xf32>
    %41 = arith.subf %40, %37 : vector<1x1x256xf32>
    %42 = arith.mulf %41, %41 : vector<1x1x256xf32>
    %43 = arith.mulf %42, %41 : vector<1x1x256xf32>
    %44 = arith.mulf %43, %39 : vector<1x1x256xf32>
    %cst_11 = arith.constant 0.000000e+00 : f32
    %45 = vector.broadcast %cst_11 : f32 to vector<1x1x256xf32>
    %46 = arith.select %17, %44, %45 : vector<1x1x256xi1>, vector<1x1x256xf32>
    %47 = vector.shape_cast %46 : vector<1x1x256xf32> to vector<1x1x1x256xf32>
    %cst_12 = arith.constant dense<0.000000e+00> : vector<1xf32>
    %48 = vector.multi_reduction <add>, %47, %cst_12 [1, 2, 3] : vector<1x1x1x256xf32> to vector<1xf32>
    %49 = vector.shape_cast %48 : vector<1xf32> to vector<1x1x1x1xf32>
    %50 = vector.extract %49[0, 0, 0, 0] : f32 from vector<1x1x1x1xf32>
    %51 = arith.extui %17 : vector<1x1x256xi1> to vector<1x1x256xi32>
    %52 = arith.sitofp %51 : vector<1x1x256xi32> to vector<1x1x256xf32>
    %53 = vector.shape_cast %52 : vector<1x1x256xf32> to vector<1x1x1x256xf32>
    %cst_13 = arith.constant dense<0.000000e+00> : vector<1xf32>
    %54 = vector.multi_reduction <add>, %53, %cst_13 [1, 2, 3] : vector<1x1x1x256xf32> to vector<1xf32>
    %55 = vector.shape_cast %54 : vector<1xf32> to vector<1x1x1x1xf32>
    %56 = vector.extract %55[0, 0, 0, 0] : f32 from vector<1x1x1x1xf32>
    %57 = tpu.iota {dimensions = array<i32: 2>} : vector<1x1x2xi32>
    %c0_i32_14 = arith.constant 0 : i32
    %58 = vector.broadcast %c0_i32_14 : i32 to vector<1x1x2xi32>
    %59 = arith.cmpi eq, %57, %58 : vector<1x1x2xi32>
    %60 = vector.broadcast %50 : f32 to vector<1x1x2xf32>
    %61 = vector.broadcast %56 : f32 to vector<1x1x2xf32>
    %62 = arith.select %59, %60, %61 : vector<1x1x2xi1>, vector<1x1x2xf32>
    %c0_15 = arith.constant 0 : index
    %c0_16 = arith.constant 0 : index
    %c0_17 = arith.constant 0 : index
    %63 = vector.load %arg4[%c0_15, %c0_16, %c0_17] : memref<1x1x2xf32, #tpu.memory_space<vmem>>, vector<1x1x2xf32>
    tpu.vector_store %arg4[%c0_15, %c0_16, %c0_17], %62 {strides = array<i32>} : memref<1x1x2xf32, #tpu.memory_space<vmem>>, vector<1x1x2xf32>,
    return
  }
  func.func @transform_0(%arg0: i32, %arg1: i32) -> (i32, i32, i32) {
    %c0_i32 = arith.constant 0 : i32
    %c0_i32_0 = arith.constant 0 : i32
    return %arg0, %c0_i32, %arg1 : i32, i32, i32
  }
  func.func @transform_1(%arg0: i32, %arg1: i32) -> (i32, i32, i32) {
    %c0_i32 = arith.constant 0 : i32
    %c0_i32_0 = arith.constant 0 : i32
    return %arg0, %c0_i32, %arg1 : i32, i32, i32
  }
  func.func @transform_2(%arg0: i32, %arg1: i32) -> (i32, i32, i32) {
    %c1_i32 = arith.constant 1 : i32
    %0 = arith.muli %arg0, %c1_i32 : i32
    %1 = arith.addi %0, %arg1 : i32
    %c0_i32 = arith.constant 0 : i32
    %c0_i32_0 = arith.constant 0 : i32
    %c0_i32_1 = arith.constant 0 : i32
    return %1, %c0_i32, %c0_i32_0 : i32, i32, i32
  }
}

</mosaic_0001>

<llo_original>
// kernel: tpu_custom_call.1
$region0: #{tpu_custom_call.1}
  #allocation0 [shape = 'u32[]', space=smem, size = 0x4, offset = 0x4, fixed_abs, tag = 'smem constant byte address 0x4 - core index']
  #allocation1 [shape = 'u32[144,128]{1,0:T(1,128)}', space=vmem, size = 0x12000, scoped, tag = 'internal scratch']
  %s0 = inlined_call_operand.hbm [shape: f32[2,4,256], index: 0, kind: input, shape index: {}]
  %s1 = inlined_call_operand.hbm [shape: s32[2,1,256], index: 1, kind: input, shape index: {}]
  %s2 = inlined_call_operand.hbm [shape: f32[2,1,2], index: 2, kind: output, shape index: {}]
  %s3 = sld [smem:[#allocation0]]
  $region49: #{tpu_custom_call.1} parent=0
    _
  %s5 = ssub.s32 1, %s3
  %s6 = scalar_select 0, %s5, %s3
  $region1: #{tpu_custom_call.1} parent=0
    #allocation2 [shape = 'u8[8192]{0}', space=vmem, size = 0x2000, scoped, tag = 'input window, operand 0']
    #allocation3 [shape = 's32[2]{0}', space=sflag, size = 0x8, scoped, tag = 'scoped memory for tpu_custom_call.1']
    #allocation4 [shape = 's32[2]{0}', space=sflag, size = 0x8, scoped, tag = 'scoped memory for tpu_custom_call.1']
    #allocation5 [shape = 'u8[2048]{0}', space=vmem, size = 0x800, scoped, tag = 'input window, operand 1']
    #allocation6 [shape = 's32[2]{0}', space=sflag, size = 0x8, scoped, tag = 'scoped memory for tpu_custom_call.1']
    #allocation7 [shape = 'u8[1024]{0}', space=vmem, size = 0x400, scoped, tag = 'output window, operand 0']
    %7 = vsyncpa [#allocation3], 0
    %s8 = scalar_lea.sflag [#allocation3], 1
    %9 = vsyncpa %s8, 0
    %10 = vsyncpa [#allocation6], 0
    %s11 = scalar_lea.sflag [#allocation6], 1
    %12 = vsyncpa %s11, 0
    %13 = vsyncpa [#allocation4], 0
    %s14 = scalar_lea.sflag [#allocation4], 1
    %15 = vsyncpa %s14, 0
    loop: start=0, step=1, limit=4
    $region2: #{tpu_custom_call.1} parent=1 // loop_pre_header
      _
    $region3: #{tpu_custom_call.1} parent=1 // loop_header
      %s17 = sphi 0, %s21
      %p18 = scmp.ge.s32.totalorder %s17, 4
      %s24 = sphi 0, %s36
      %s25 = sphi 0, %s32
      %s26 = sphi 0, %s24
      %s27 = sphi 0, %s25
      %s28 = sphi 0, %s26
      %s29 = sphi 0, %s27
      %s41 = sphi 0, %s43
      %s44 = sphi 0, %s41
      %s45 = sphi 0, %s44
      %s61 = sphi 0, %s45
      %s69 = sphi 0, %s71
      %s72 = sphi 0, %s69
      %s73 = sphi 0, %s72
      %s89 = sphi 0, %s73
      %s97 = sphi 0, %s99
      %s100 = sphi 0, %s97
      %s101 = sphi 0, %s100
      %s117 = sphi 0, %s101
    $region4: #{tpu_custom_call.1} parent=1 // loop_header_branch
      %20 = sbr.rel (%p18) target = $region8
    $region5: #{tpu_custom_call.1} parent=1 // loop_body
      %s22 = ssub.s32 %s17, 1
      %s23 = ssub.s32 %s17, 2
      %s30 = sadd.s32 1, %s25
      %p31 = scmp.ge.s32.totalorder %s30, 1
      %s32 = scalar_select %p31, 0, %s30
      %s33 = sadd.s32 1, %s24
      %s34 = scalar_select %p31, %s33, %s24
      %p35 = scmp.ge.s32.totalorder %s34, 2
      %s36 = scalar_select %p35, 0, %s34
      %s37 = ssub.s32 %s24, %s36
      %s38 = ssub.s32 %s25, %s32
      %s39 = sor.u32 %s37, %s38
      %p40 = scmp.eq.s32.totalorder %s39, 0
      %s42 = sadd.s32 %s41, 1
      %s43 = scalar_select %p40, %s41, %s42
      %p46 = pneg %p40
      %p47 = scmp.eq.s32.totalorder %s17, 1
      %p48 = por %p46, %p47
      %p49 = scmp.ne.s32.totalorder %s41, %s44
      %p50 = scmp.eq.s32.totalorder %s17, 0
      %p51 = por %p49, %p50
      %p52 = scmp.ne.s32.totalorder %s41, %s44
      %p53 = scmp.eq.s32.totalorder %s22, 1
      %p54 = por %p52, %p53
      %p55 = scmp.ne.s32.totalorder %s44, %s45
      %p56 = scmp.eq.s32.totalorder %s22, 0
      %p57 = por %p55, %p56
      %p58 = scmp.ne.s32.totalorder %s44, %s45
      %p59 = scmp.eq.s32.totalorder %s23, 1
      %p60 = por %p58, %p59
      %p62 = scmp.ne.s32.totalorder %s45, %s61
      %p63 = scmp.eq.s32.totalorder %s23, 0
      %p64 = por %p62, %p63
      %s65 = ssub.s32 %s24, %s36
      %s66 = ssub.s32 %s25, %s32
      %s67 = sor.u32 %s65, %s66
      %p68 = scmp.eq.s32.totalorder %s67, 0
      %s70 = sadd.s32 %s69, 1
      %s71 = scalar_select %p68, %s69, %s70
      %p74 = pneg %p68
      %p75 = scmp.eq.s32.totalorder %s17, 1
      %p76 = por %p74, %p75
      %p77 = scmp.ne.s32.totalorder %s69, %s72
      %p78 = scmp.eq.s32.totalorder %s17, 0
      %p79 = por %p77, %p78
      %p80 = scmp.ne.s32.totalorder %s69, %s72
      %p81 = scmp.eq.s32.totalorder %s22, 1
      %p82 = por %p80, %p81
      %p83 = scmp.ne.s32.totalorder %s72, %s73
      %p84 = scmp.eq.s32.totalorder %s22, 0
      %p85 = por %p83, %p84
      %p86 = scmp.ne.s32.totalorder %s72, %s73
      %p87 = scmp.eq.s32.totalorder %s23, 1
      %p88 = por %p86, %p87
      %p90 = scmp.ne.s32.totalorder %s73, %s89
      %p91 = scmp.eq.s32.totalorder %s23, 0
      %p92 = por %p90, %p91
      %s93 = sadd.s32 %s24, %s25
      %s94 = sadd.s32 %s36, %s32
      %s95 = ssub.s32 %s93, %s94
      %p96 = scmp.eq.s32.totalorder %s95, 0
      %s98 = sadd.s32 %s97, 1
      %s99 = scalar_select %p96, %s97, %s98
      %p102 = pneg %p96
      %p103 = scmp.eq.s32.totalorder %s17, 1
      %p104 = por %p102, %p103
      %p105 = scmp.ne.s32.totalorder %s97, %s100
      %p106 = scmp.eq.s32.totalorder %s17, 0
      %p107 = por %p105, %p106
      %p108 = scmp.ne.s32.totalorder %s97, %s100
      %p109 = scmp.eq.s32.totalorder %s22, 1
      %p110 = por %p108, %p109
      %p111 = scmp.ne.s32.totalorder %s100, %s101
      %p112 = scmp.eq.s32.totalorder %s22, 0
      %p113 = por %p111, %p112
      %p114 = scmp.ne.s32.totalorder %s100, %s101
      %p115 = scmp.eq.s32.totalorder %s23, 1
      %p116 = por %p114, %p115
      %p118 = scmp.ne.s32.totalorder %s101, %s117
      %p119 = scmp.eq.s32.totalorder %s23, 0
      %p120 = por %p118, %p119
      %p121 = scmp.le.s32.totalorder 1, %s17
      %p122 = scmp.lt.s32.totalorder %s17, 3
      %p123 = pnand %p121, %p122
      %p124 = pneg %p123
      // Predicated region
      $region9: #{tpu_custom_call.1} parent=5 // pred_check
        _
      $region10: #{tpu_custom_call.1} parent=5 // pred_check_branch
        %126 = sbr.rel (%p123) target = $region12
      $region11: #{tpu_custom_call.1} parent=5 // pred_region
        %s127 = ssub.s32 %s17, 1
      $region12: #{tpu_custom_call.1} parent=5 // pred_fallthru
        _
      %p128 = scmp.lt.s32.totalorder %s17, 2
      // Predicated region
      $region13: #{tpu_custom_call.1} parent=5 // pred_check
        %p129 = pneg %p128
      $region14: #{tpu_custom_call.1} parent=5 // pred_check_branch
        %131 = sbr.rel (%p129) target = $region16
      $region15: #{tpu_custom_call.1} parent=5 // pred_region
        // Predicated region
        $region17: #{tpu_custom_call.1} parent=15 // pred_check
          %p132 = pneg %p51
        $region18: #{tpu_custom_call.1} parent=15 // pred_check_branch
          %134 = sbr.rel (%p132) target = $region20
        $region19: #{tpu_custom_call.1} parent=15 // pred_region
          %s135 = sand.u32 %s41, 1
          %s136 = scalar_lea.sflag [#allocation3], %s135
          %s137 = sand.u32 %s41, 1
          %s138 = smul.addr %s137, 8
          %s139 = scalar_lea.vmem [#allocation2], %s138
          %s140 = smul.u32 2, %s25
          %s142 = ssub.s32 128, 128
          %143 = vsyncadd %s136, %s142
          %s144 = smul.addr %s24, 2
          %s145 = sadd.s32 %s140, %s144
          %s146 = smul.addr %s145, 64
          %s147 = scalar_lea.hbm %s0, %s146
          %s149 = sshll.u32 %s139, 4
          %s150 = int_to_ptr.vmem [resolvable:$true] %s149
          %152 = dma.hbm_to_vmem [thread:$0]  %s147, 128, %s150, %s136
        $region20: #{tpu_custom_call.1} parent=15 // pred_fallthru
          _
        // Predicated region
        $region21: #{tpu_custom_call.1} parent=15 // pred_check
          %p153 = pneg %p79
        $region22: #{tpu_custom_call.1} parent=15 // pred_check_branch
          %155 = sbr.rel (%p153) target = $region24
        $region23: #{tpu_custom_call.1} parent=15 // pred_region
          %s156 = sand.u32 %s69, 1
          %s157 = scalar_lea.sflag [#allocation6], %s156
          %s158 = sand.u32 %s69, 1
          %s159 = smul.addr %s158, 2
          %s160 = scalar_lea.vmem [#allocation5], %s159
          %s161 = smul.u32 2, %s25
          %s163 = ssub.s32 32, 32
          %164 = vsyncadd %s157, %s163
          %s165 = smul.addr %s24, 2
          %s166 = sadd.s32 %s161, %s165
          %s167 = smul.addr %s166, 16
          %s168 = scalar_lea.hbm %s1, %s167
          %s170 = sshll.u32 %s160, 4
          %s171 = int_to_ptr.vmem [resolvable:$true] %s170
          %173 = dma.hbm_to_vmem [thread:$0]  %s168, 32, %s171, %s157
        $region24: #{tpu_custom_call.1} parent=15 // pred_fallthru
          _
      $region16: #{tpu_custom_call.1} parent=5 // pred_fallthru
        _
      %p174 = scmp.le.s32.totalorder 1, %s17
      %p175 = scmp.lt.s32.totalorder %s17, 3
      %p176 = pnand %p174, %p175
      %p177 = pneg %p176
      // Predicated region
      $region25: #{tpu_custom_call.1} parent=5 // pred_check
        _
      $region26: #{tpu_custom_call.1} parent=5 // pred_check_branch
        %179 = sbr.rel (%p176) target = $region28
      $region27: #{tpu_custom_call.1} parent=5 // pred_region
        %s180 = ssub.s32 %s17, 1
        %s181 = sand.u32 %s44, 1
        %s182 = scalar_lea.sflag [#allocation3], %s181
        %s183 = sand.u32 %s44, 1
        %s184 = smul.addr %s183, 8
        %s185 = scalar_lea.vmem [#allocation2], %s184
        // Predicated region
        $region29: #{tpu_custom_call.1} parent=27 // pred_check
          %p186 = pneg %p57
        $region30: #{tpu_custom_call.1} parent=27 // pred_check_branch
          %188 = sbr.rel (%p186) target = $region32
        $region31: #{tpu_custom_call.1} parent=27 // pred_region
          %189 = dma.done %s182, 128
        $region32: #{tpu_custom_call.1} parent=27 // pred_fallthru
          _
        %s190 = sand.u32 %s72, 1
        %s191 = scalar_lea.sflag [#allocation6], %s190
        %s192 = sand.u32 %s72, 1
        %s193 = smul.addr %s192, 2
        %s194 = scalar_lea.vmem [#allocation5], %s193
        // Predicated region
        $region33: #{tpu_custom_call.1} parent=27 // pred_check
          %p195 = pneg %p85
        $region34: #{tpu_custom_call.1} parent=27 // pred_check_branch
          %197 = sbr.rel (%p195) target = $region36
        $region35: #{tpu_custom_call.1} parent=27 // pred_region
          %198 = dma.done %s191, 32
        $region36: #{tpu_custom_call.1} parent=27 // pred_fallthru
          _
        %s199 = sand.u32 %s44, 1
        %s200 = scalar_lea.sflag [#allocation3], %s199
        %s201 = sand.u32 %s44, 1
        %s202 = smul.addr %s201, 8
        %s203 = scalar_lea.vmem [#allocation2], %s202
        %p204 = pneg %p57
        %p205 = pneg %p54
        %s206 = sand.u32 %s72, 1
        %s207 = scalar_lea.sflag [#allocation6], %s206
        %s208 = sand.u32 %s72, 1
        %s209 = smul.addr %s208, 2
        %s210 = scalar_lea.vmem [#allocation5], %s209
        %p211 = pneg %p85
        %p212 = pneg %p82
        %p213 = pneg %p113
        %p214 = pneg %p110
        %s215 = sand.u32 %s100, 1
        %s216 = scalar_lea.sflag [#allocation4], %s215
        %s217 = sand.u32 %s100, 1
        %s218 = scalar_lea.vmem [#allocation7], %s217
        %s219 = smul.u32 2, %s27
        %s220 = smul.u32 2, %s27
        %s221 = sadd.s32 %s26, %s27
        %v222 = vld [vmem:[%s185] sm:$0xff]
        %v223 = vld [vmem:[%s194] sm:$0x3]
        %s224 = smul.u32 %s27, 256
        %v225 = vstv %s26
        %v226 = vlaneseq
        %v227 = vand.u32 %v226, 127
        %v228 = vadd.s32 %v227, 128
        %v229 = vstv %s224
        %v230 = vadd.s32 %v229, %v227
        %v231 = vadd.s32 %v229, %v228
        %vm232 = vcmp.lt.s32.totalorder %v225, 2
        %vm233 = vcmp.lt.s32.totalorder %v230, 256
        %vm234 = vcmp.lt.s32.totalorder %v231, 256
        %vm235 = vmand %vm232, %vm233
        %vm236 = vmand %vm232, %vm234
        %vm237 = vcmp.ne.s32.totalorder %v223, 4294967196
        %v238 = vsel %vm237, 1, 0
        %v239 = vlaneseq
        %v240 = vshrl.u32 %v239, 7
        %v241 = vsub.s32 0, %v240
        %v242 = vrot.slane %v238, %v241
        %v243 = vlaneseq
        %v244 = vshrl.u32 %v243, 7
        %v245 = vsub.s32 1, %v244
        %v246 = vrot.slane %v238, %v245
        %vm247 = vcmp.ne.s32.totalorder %v242, 0
        %vm248 = vcmp.ne.s32.totalorder %v246, 0
        %vm249 = vmand %vm235, %vm247
        %vm250 = vmand %vm236, %vm248
        %v251 = vlaneseq
        %v252 = vshrl.u32 %v251, 7
        %v253 = vsub.s32 0, %v252
        %v254 = vrot.slane %v223, %v253
        %v255 = vlaneseq
        %v256 = vshrl.u32 %v255, 7
        %v257 = vsub.s32 1, %v256
        %v258 = vrot.slane %v223, %v257
        %v259 = vsel %vm249, %v254, 0
        %v260 = vsel %vm250, %v258, 0
        %v262 = vcombine.high %v222, %v222
        %vm264 = vcmask 1043456
        %v265 = vsel %vm264, %v222, -inf
        %v266 = vrot.slane %v265, 4
        %v267 = vmax.f32 %v265, %v266
        %v268 = vrot.slane %v267, 2
        %v269 = vmax.f32 %v267, %v268
        %v270 = vrot.slane %v269, 1
        %v271 = vmax.f32 %v269, %v270
        %v272 = vsel %vm264, %v262, -inf
        %v273 = vrot.slane %v272, 4
        %v274 = vmax.f32 %v272, %v273
        %v275 = vrot.slane %v274, 2
        %v276 = vmax.f32 %v274, %v275
        %v277 = vrot.slane %v276, 1
        %v278 = vmax.f32 %v276, %v277
        %v281 = vcombine.low %v271, %v278
        %v283 = vsub.f32 %v222, %v281
        %v284 = vmul.f32 %v283, 1.442695
        %v285 = vpow.pop %v284
        %v287 = vcombine.high %v285, %v285
        %v289 = vsel %vm264, %v285, 0.0
        %v290 = vrot.slane %v289, 4
        %v291 = vadd.f32 %v289, %v290
        %v292 = vrot.slane %v291, 2
        %v293 = vadd.f32 %v291, %v292
        %v294 = vrot.slane %v293, 1
        %v295 = vadd.f32 %v293, %v294
        %v296 = vsel %vm264, %v287, 0.0
        %v297 = vrot.slane %v296, 4
        %v298 = vadd.f32 %v296, %v297
        %v299 = vrot.slane %v298, 2
        %v300 = vadd.f32 %v298, %v299
        %v301 = vrot.slane %v300, 1
        %v302 = vadd.f32 %v300, %v301
        %v303 = vlog2.pop %v295
        %v304 = vmul.f32 %v303, 0.6931472
        %v305 = vlog2.pop %v302
        %v306 = vmul.f32 %v305, 0.6931472
        %v307 = vadd.f32 %v271, %v304
        %v308 = vadd.f32 %v278, %v306
        %v309 = vlaneseq
        %v310 = vshrl.u32 %v309, 7
        %v311 = vlaneseq
        %v312 = vshrl.u32 %v311, 7
        %v313 = vsub.s32 0, %v312
        %v314 = vrot.slane %v259, %v313
        %v315 = vlaneseq
        %v316 = vshrl.u32 %v315, 7
        %v317 = vsub.s32 0, %v316
        %v318 = vrot.slane %v260, %v317
        %vm319 = vcmp.eq.s32.totalorder %v310, %v314
        %vm320 = vcmp.eq.s32.totalorder %v310, %v318
        %v321 = vsel %vm319, %v222, 0.0
        %v322 = vsel %vm320, %v262, 0.0
        %v323 = vsel %vm264, %v321, 0.0
        %v324 = vrot.slane %v323, 4
        %v325 = vadd.f32 %v323, %v324
        %v326 = vrot.slane %v325, 2
        %v327 = vadd.f32 %v325, %v326
        %v328 = vrot.slane %v327, 1
        %v329 = vadd.f32 %v327, %v328
        %v330 = vsel %vm264, %v322, 0.0
        %v331 = vrot.slane %v330, 4
        %v332 = vadd.f32 %v330, %v331
        %v333 = vrot.slane %v332, 2
        %v334 = vadd.f32 %v332, %v333
        %v335 = vrot.slane %v334, 1
        %v336 = vadd.f32 %v334, %v335
        %v337 = vsub.f32 %v329, %v307
        %v338 = vsub.f32 %v336, %v308
        %v339 = vmul.f32 %v337, 1.442695
        %v340 = vpow.pop %v339
        %v341 = vmul.f32 %v338, 1.442695
        %v342 = vpow.pop %v341
        %v343 = vsub.f32 0.0, %v337
        %v344 = vsub.f32 0.0, %v338
        %v345 = vsub.f32 1.0, %v340
        %v346 = vsub.f32 1.0, %v342
        %v347 = vmul.f32 %v345, %v345
        %v348 = vmul.f32 %v346, %v346
        %v349 = vmul.f32 %v347, %v345
        %v350 = vmul.f32 %v348, %v346
        %v351 = vmul.f32 %v349, %v343
        %v352 = vmul.f32 %v350, %v344
        %v353 = vsel %vm249, %v351, 0.0
        %v354 = vsel %vm250, %v352, 0.0
        %vm355 = vcmask 1040384
        %v356 = vsel %vm355, %v353, 0.0
        %v357 = vsel %vm355, %v354, 0.0
        %v358 = vadd.f32 %v356, %v357
        %359 = vadd.xlane.f32.xlu0 %v358
        %v360 = vpop.xlane.xlu0 %359
        %v361 = vrot.slane %v360, 4
        %v362 = vadd.f32 %v360, %v361
        %v363 = vrot.slane %v362, 2
        %v364 = vadd.f32 %v362, %v363
        %v365 = vrot.slane %v364, 1
        %v366 = vadd.f32 %v364, %v365
        %s367 = vtos %v366
        %v368 = vsel %vm249, 1, 0
        %v369 = vsel %vm250, 1, 0
        %v370 = vcvt.s32.f32 %v368
        %v371 = vcvt.s32.f32 %v369
        %v372 = vsel %vm355, %v370, 0.0
        %v373 = vsel %vm355, %v371, 0.0
        %v374 = vadd.f32 %v372, %v373
        %375 = vadd.xlane.f32.xlu0 %v374
        %v376 = vpop.xlane.xlu0 %375
        %v377 = vrot.slane %v376, 4
        %v378 = vadd.f32 %v376, %v377
        %v379 = vrot.slane %v378, 2
        %v380 = vadd.f32 %v378, %v379
        %v381 = vrot.slane %v380, 1
        %v382 = vadd.f32 %v380, %v381
        %s383 = vtos %v382
        %vm384 = vcmp.eq.s32.totalorder %v227, 0
        %v385 = vstv %s367
        %v386 = vstv %s383
        %v387 = vsel %vm384, %v385, %v386
        %vm388 = vcmask 8192
        %389 = vst.msk [vmem:[%s218] sm:$0x1] %vm388, %v387
        %s390 = sand.u32 %s100, 1
        %s391 = scalar_lea.sflag [#allocation4], %s390
        %s392 = sand.u32 %s100, 1
        %s393 = scalar_lea.vmem [#allocation7], %s392
        // Predicated region
        $region37: #{tpu_custom_call.1} parent=27 // pred_check
          %p394 = pneg %p110
        $region38: #{tpu_custom_call.1} parent=27 // pred_check_branch
          %396 = sbr.rel (%p394) target = $region40
        $region39: #{tpu_custom_call.1} parent=27 // pred_region
          %s397 = sadd.s32 %s26, %s27
          %s399 = ssub.s32 16, 16
          %400 = vsyncadd %s391, %s399
          %s401 = smul.addr %s397, 16
          %s402 = scalar_lea.hbm %s2, %s401
          %s404 = sshll.u32 %s393, 4
          %s405 = int_to_ptr.vmem [resolvable:$true] %s404
          %407 = dma.vmem_to_hbm [thread:$0]  %s405, 16, %s402, %s391
        $region40: #{tpu_custom_call.1} parent=27 // pred_fallthru
          _
      $region28: #{tpu_custom_call.1} parent=5 // pred_fallthru
        _
      %p408 = scmp.le.s32.totalorder 2, %s17
      // Predicated region
      $region41: #{tpu_custom_call.1} parent=5 // pred_check
        %p409 = pneg %p408
      $region42: #{tpu_custom_call.1} parent=5 // pred_check_branch
        %411 = sbr.rel (%p409) target = $region44
      $region43: #{tpu_custom_call.1} parent=5 // pred_region
        %s412 = ssub.s32 %s17, 2
        // Predicated region
        $region45: #{tpu_custom_call.1} parent=43 // pred_check
          %p413 = pneg %p116
        $region46: #{tpu_custom_call.1} parent=43 // pred_check_branch
          %415 = sbr.rel (%p413) target = $region48
        $region47: #{tpu_custom_call.1} parent=43 // pred_region
          %s416 = sand.u32 %s101, 1
          %s417 = scalar_lea.sflag [#allocation4], %s416
          %s418 = sand.u32 %s101, 1
          %s419 = scalar_lea.vmem [#allocation7], %s418
          %420 = dma.done %s417, 16
        $region48: #{tpu_custom_call.1} parent=43 // pred_fallthru
          _
      $region44: #{tpu_custom_call.1} parent=5 // pred_fallthru
        _
    $region6: #{tpu_custom_call.1} parent=1 // loop_footer
      %s21 = sadd.s32 1, %s17
    $region7: #{tpu_custom_call.1} parent=1 // loop_footer_branch
      %16 = sbr.rel target = $region3
    $region8: #{tpu_custom_call.1} parent=1 // loop_exit
      _
    %421 = vsyncpa [#allocation3], 1
    %s422 = scalar_lea.sflag [#allocation3], 1
    %423 = vsyncpa %s422, 1
    %424 = vsyncpa [#allocation6], 1
    %s425 = scalar_lea.sflag [#allocation6], 1
    %426 = vsyncpa %s425, 1
    %427 = vsyncpa [#allocation4], 1
    %s428 = scalar_lea.sflag [#allocation4], 1
    %429 = vsyncpa %s428, 1

</llo_original>
